<compile_context>
chip_gen: v7x
topology: tpu7x:2x2x1
jax: 0.10.0
libtpu: 0.0.40
codegen_flags: <defaults>
</compile_context>

<pallas_src>
import functools

import jax
import jax.numpy as jnp
from jax.experimental import pallas as pl
from jax.experimental.pallas import tpu as pltpu


def _attention_kernel(x_ref, w_ref, b_ref, o_ref, m_sc, l_sc, acc_sc,
                      *, seq_len, seq_padded):
    """Processes one (BB, TT, D) tile of x; online softmax over the seq axis."""
    j = pl.program_id(1)
    tt = x_ref.shape[1]

    @pl.when(j == 0)
    def _init():
        m_sc[...] = jnp.full_like(m_sc, -jnp.inf)
        l_sc[...] = jnp.zeros_like(l_sc)
        acc_sc[...] = jnp.zeros_like(acc_sc)

    x = x_ref[...]                      # (BB, TT, D)
    w = w_ref[...]                      # (1, D) f32, lane-dense
    b = b_ref[0, 0]                     # scalar bias from SMEM

    # Scores, lane-major: s[b, t] = tanh(<x[b, t, :], w> + bias)  -> (BB, TT)
    s = jnp.sum(x * w, axis=-1, dtype=jnp.float32) + b
    s = jnp.tanh(s)

    if seq_padded != seq_len:           # static: only traced when T was padded
        t_pos = j * tt + jax.lax.broadcasted_iota(jnp.int32, s.shape, 1)
        s = jnp.where(t_pos < seq_len, s, -jnp.inf)

    # Online softmax update (running max / denominator), stats in f32.
    m_prev = m_sc[...]                                          # (BB, 1)
    m_new = jnp.maximum(m_prev, jnp.max(s, axis=-1, keepdims=True))
    alpha = jnp.exp(m_prev - m_new)                             # (BB, 1)
    p = jnp.exp(s - m_new)                                      # (BB, TT)

    l_sc[...] = alpha * l_sc[...] + jnp.sum(p, axis=-1, keepdims=True)
    # Weighted partial sum over this seq tile with f32 accumulation.  The
    # elementwise-multiply + sublane reduce lowers unconditionally; compute is
    # free filler since HBM bandwidth is the roofline for this kernel.
    acc_sc[...] = alpha * acc_sc[...] + jnp.sum(
        x * p[:, :, None], axis=1, dtype=jnp.float32)
    m_sc[...] = m_new

    @pl.when(j == pl.num_programs(1) - 1)
    def _finalize():
        o_ref[...] = (acc_sc[...] / l_sc[...]).astype(o_ref.dtype)


def _round_up(n, m):
    return ((n + m - 1) // m) * m


def attention_layer(x, w, b, *, block_b=None, block_t=None,
                    vmem_limit_bytes=64 * 1024 * 1024):
    """x: (B, T, D); w: (1, D) fc weight; b: (1,) fc bias  ->  (B, D)."""
    B, T, D = x.shape
    itemsize = jnp.dtype(x.dtype).itemsize
    target_bytes = 4 * 1024 * 1024      # ~4 MiB x tiles: near the HBM roofline

    # --- sequence tiling ------------------------------------------------------
    if block_t is None:
        max_t = max(8, (target_bytes // (8 * D * itemsize)) // 8 * 8)
        block_t = min(T, max_t, 512)
    if block_t >= T:
        block_t = T
        t_pad = T
    else:
        block_t = max(8, _round_up(block_t, 8))
        t_pad = _round_up(T, block_t)

    # --- batch tiling: multiple of 8 rows -> sublane-dense (BB, D) output -----
    if block_b is None:
        bb = target_bytes // max(1, block_t * D * itemsize)
        bb = max(8, (bb // 8) * 8)
        block_b = min(bb, _round_up(B, 8))
    block_b = max(8, _round_up(block_b, 8))
    b_pad = _round_up(B, block_b)

    # Zero-pad batch/seq; padded seq positions are masked in-kernel, padded
    # batch rows produce zeros and are sliced off below.
    if (b_pad, t_pad) != (B, T):
        x = jnp.pad(x, ((0, b_pad - B), (0, t_pad - T), (0, 0)))

    w_row = w.reshape(1, D).astype(jnp.float32)       # lane-dense weight row
    b_smem = b.reshape(1, 1).astype(jnp.float32)      # scalar bias -> SMEM

    kernel = functools.partial(_attention_kernel, seq_len=T, seq_padded=t_pad)
    grid = (b_pad // block_b, t_pad // block_t)

    out = pl.pallas_call(
        kernel,
        out_shape=jax.ShapeDtypeStruct((b_pad, D), x.dtype),
        grid_spec=pltpu.PrefetchScalarGridSpec(
            num_scalar_prefetch=0,
            grid=grid,
            in_specs=[
                pl.BlockSpec((block_b, block_t, D), lambda i, j: (i, j, 0)),
                pl.BlockSpec((1, D), lambda i, j: (0, 0)),
                pl.BlockSpec(memory_space=pltpu.MemorySpace.SMEM),
            ],
            out_specs=pl.BlockSpec((block_b, D), lambda i, j: (i, 0)),
            scratch_shapes=[
                pltpu.VMEM((block_b, 1), jnp.float32),   # running max
                pltpu.VMEM((block_b, 1), jnp.float32),   # running denominator
                pltpu.VMEM((block_b, D), jnp.float32),   # weighted-sum acc
            ],
        ),
        compiler_params=pltpu.CompilerParams(
            dimension_semantics=("parallel", "arbitrary"),
            # Actual per-step usage is far below this; raising the scoped limit
            # just allows bigger tiles on v5e/v6e without recompiling flags.
            vmem_limit_bytes=vmem_limit_bytes,
        ),
    )(x, w_row, b_smem)

    return out[:B]


def _reference(x, w, b):
    # Pure-JAX reference mirroring the PyTorch forward.
    s = jnp.tanh(jnp.einsum("btd,od->bto", x, w) + b)   # (B, T, 1)
    p = jax.nn.softmax(s[..., 0], axis=1)[..., None]    # (B, T, 1)
    return jnp.sum(x * p, axis=1)                       # (B, D)


if __name__ == "__main__":
    key = jax.random.PRNGKey(0)
    kx, kw, kb, kx2 = jax.random.split(key, 4)

    # Small shapes matching the PyTorch module (batch, seq, d_model).
    B, T, D = 2, 8, 32
    x = jax.random.normal(kx, (B, T, D), dtype=jnp.float32)
    fc_w = jax.random.normal(kw, (1, D), dtype=jnp.float32) * 0.1
    fc_b = jax.random.normal(kb, (1,), dtype=jnp.float32) * 0.1

    out = jax.block_until_ready(attention_layer(x, fc_w, fc_b))
    ref = _reference(x, fc_w, fc_b)
    assert out.shape == (B, D)
    assert jnp.allclose(out, ref, atol=1e-5, rtol=1e-5), "mismatch (small)"

    # Larger shape exercising batch blocking, seq tiling + masking, online softmax.
    B2, T2, D2 = 5, 520, 128
    x2 = jax.random.normal(kx2, (B2, T2, D2), dtype=jnp.float32)
    fc_w2 = jax.random.normal(kw, (1, D2), dtype=jnp.float32) * 0.1
    fc_b2 = jax.random.normal(kb, (1,), dtype=jnp.float32) * 0.1

    out2 = jax.block_until_ready(attention_layer(x2, fc_w2, fc_b2))
    ref2 = _reference(x2, fc_w2, fc_b2)
    assert out2.shape == (B2, D2)
    assert jnp.allclose(out2, ref2, atol=1e-4, rtol=1e-4), "mismatch (tiled)"

    print("KERNEL_OK")
</pallas_src>

<mosaic_0001>
module attributes {stable_mosaic.version = 11 : i64} {
  func.func @_attention_kernel(%arg0: i32, %arg1: i32, %arg2: memref<8x8x32xf32, #tpu.memory_space<vmem>>, %arg3: memref<1x32xf32, #tpu.memory_space<vmem>>, %arg4: memref<1x1xf32, #tpu.memory_space<smem>>, %arg5: memref<8x32xf32, #tpu.memory_space<vmem>>, %arg6: memref<8x1xf32, #tpu.memory_space<vmem>>, %arg7: memref<8x1xf32, #tpu.memory_space<vmem>>, %arg8: memref<8x32xf32, #tpu.memory_space<vmem>>) attributes {dimension_semantics = [#tpu.dimension_semantics<parallel>, #tpu.dimension_semantics<arbitrary>], iteration_bounds = array<i64: 1, 1>, scalar_prefetch = 0 : i64, scratch_operands = 3 : i64, tpu.core_type = #tpu.core_type<tc>, window_params = [{transform_indices = @transform_0, window_bounds = array<i64: 8, 8, 32>}, {pipeline_mode = #tpu.pipeline_mode<synchronous>, transform_indices = @transform_1, window_bounds = array<i64: 1, 32>}, {transform_indices = @transform_2, window_bounds = array<i64: 1, 1>}, {transform_indices = @transform_3, window_bounds = array<i64: 8, 32>}]} {
    %c0_i32 = arith.constant 0 : i32
    %0 = arith.cmpi eq, %arg1, %c0_i32 : i32
    %1 = arith.extui %0 : i1 to i32
    %c0_i32_0 = arith.constant 0 : i32
    %2 = arith.cmpi ne, %1, %c0_i32_0 : i32
    scf.if %2 {
      %cst_24 = arith.constant 0xFF800000 : f32
      %41 = vector.broadcast %cst_24 : f32 to vector<8x1xf32>
      %c0_25 = arith.constant 0 : index
      %c0_26 = arith.constant 0 : index
      %42 = vector.load %arg6[%c0_25, %c0_26] : memref<8x1xf32, #tpu.memory_space<vmem>>, vector<8x1xf32>
      tpu.vector_store %arg6[%c0_25, %c0_26], %41 {strides = array<i32>} : memref<8x1xf32, #tpu.memory_space<vmem>>, vector<8x1xf32>,
      %cst_27 = arith.constant 0.000000e+00 : f32
      %43 = vector.broadcast %cst_27 : f32 to vector<8x1xf32>
      %c0_28 = arith.constant 0 : index
      %c0_29 = arith.constant 0 : index
      %44 = vector.load %arg7[%c0_28, %c0_29] : memref<8x1xf32, #tpu.memory_space<vmem>>, vector<8x1xf32>
      tpu.vector_store %arg7[%c0_28, %c0_29], %43 {strides = array<i32>} : memref<8x1xf32, #tpu.memory_space<vmem>>, vector<8x1xf32>,
      %cst_30 = arith.constant 0.000000e+00 : f32
      %45 = vector.broadcast %cst_30 : f32 to vector<8x32xf32>
      %c0_31 = arith.constant 0 : index
      %c0_32 = arith.constant 0 : index
      %46 = vector.load %arg8[%c0_31, %c0_32] : memref<8x32xf32, #tpu.memory_space<vmem>>, vector<8x32xf32>
      tpu.vector_store %arg8[%c0_31, %c0_32], %45 {strides = array<i32>} : memref<8x32xf32, #tpu.memory_space<vmem>>, vector<8x32xf32>,
    } else {
    }
    %c0 = arith.constant 0 : index
    %c0_1 = arith.constant 0 : index
    %c0_2 = arith.constant 0 : index
    %3 = vector.load %arg2[%c0, %c0_1, %c0_2] : memref<8x8x32xf32, #tpu.memory_space<vmem>>, vector<8x8x32xf32>
    %c0_3 = arith.constant 0 : index
    %c0_4 = arith.constant 0 : index
    %4 = vector.load %arg3[%c0_3, %c0_4] : memref<1x32xf32, #tpu.memory_space<vmem>>, vector<1x32xf32>
    %c0_5 = arith.constant 0 : index
    %c0_6 = arith.constant 0 : index
    %5 = memref.load %arg4[%c0_5, %c0_6] : memref<1x1xf32, #tpu.memory_space<smem>>
    %6 = vector.shape_cast %4 : vector<1x32xf32> to vector<1x1x32xf32>
    %7 = vector.broadcast %6 : vector<1x1x32xf32> to vector<8x8x32xf32>
    %8 = arith.mulf %3, %7 : vector<8x8x32xf32>
    %cst = arith.constant dense<0.000000e+00> : vector<8x8xf32>
    %9 = vector.multi_reduction <add>, %8, %cst [2] : vector<8x8x32xf32> to vector<8x8xf32>
    %10 = vector.broadcast %5 : f32 to vector<8x8xf32>
    %11 = arith.addf %9, %10 : vector<8x8xf32>
    %12 = math.tanh %11 : vector<8x8xf32>
    %c0_7 = arith.constant 0 : index
    %c0_8 = arith.constant 0 : index
    %13 = vector.load %arg6[%c0_7, %c0_8] : memref<8x1xf32, #tpu.memory_space<vmem>>, vector<8x1xf32>
    %cst_9 = arith.constant dense<0xFF800000> : vector<8xf32>
    %14 = vector.multi_reduction <maximumf>, %12, %cst_9 [1] : vector<8x8xf32> to vector<8xf32>
    %15 = vector.shape_cast %14 : vector<8xf32> to vector<8x1xf32>
    %16 = arith.maximumf %13, %15 : vector<8x1xf32>
    %17 = arith.subf %13, %16 : vector<8x1xf32>
    %18 = math.exp %17 : vector<8x1xf32>
    %19 = vector.broadcast %16 : vector<8x1xf32> to vector<8x8xf32>
    %20 = arith.subf %12, %19 : vector<8x8xf32>
    %21 = math.exp %20 : vector<8x8xf32>
    %c0_10 = arith.constant 0 : index
    %c0_11 = arith.constant 0 : index
    %22 = vector.load %arg7[%c0_10, %c0_11] : memref<8x1xf32, #tpu.memory_space<vmem>>, vector<8x1xf32>
    %23 = arith.mulf %18, %22 : vector<8x1xf32>
    %cst_12 = arith.constant dense<0.000000e+00> : vector<8xf32>
    %24 = vector.multi_reduction <add>, %21, %cst_12 [1] : vector<8x8xf32> to vector<8xf32>
    %25 = vector.shape_cast %24 : vector<8xf32> to vector<8x1xf32>
    %26 = arith.addf %23, %25 : vector<8x1xf32>
    %c0_13 = arith.constant 0 : index
    %c0_14 = arith.constant 0 : index
    %27 = vector.load %arg7[%c0_13, %c0_14] : memref<8x1xf32, #tpu.memory_space<vmem>>, vector<8x1xf32>
    tpu.vector_store %arg7[%c0_13, %c0_14], %26 {strides = array<i32>} : memref<8x1xf32, #tpu.memory_space<vmem>>, vector<8x1xf32>,
    %c0_15 = arith.constant 0 : index
    %c0_16 = arith.constant 0 : index
    %28 = vector.load %arg8[%c0_15, %c0_16] : memref<8x32xf32, #tpu.memory_space<vmem>>, vector<8x32xf32>
    %29 = vector.broadcast %18 : vector<8x1xf32> to vector<8x32xf32>
    %30 = arith.mulf %29, %28 : vector<8x32xf32>
    %31 = vector.shape_cast %21 : vector<8x8xf32> to vector<8x8x1xf32>
    %32 = vector.broadcast %31 : vector<8x8x1xf32> to vector<8x8x32xf32>
    %33 = arith.mulf %3, %32 : vector<8x8x32xf32>
    %cst_17 = arith.constant dense<0.000000e+00> : vector<8x32xf32>
    %34 = vector.multi_reduction <add>, %33, %cst_17 [1] : vector<8x8x32xf32> to vector<8x32xf32>
    %35 = arith.addf %30, %34 : vector<8x32xf32>
    %c0_18 = arith.constant 0 : index
    %c0_19 = arith.constant 0 : index
    %36 = vector.load %arg8[%c0_18, %c0_19] : memref<8x32xf32, #tpu.memory_space<vmem>>, vector<8x32xf32>
    tpu.vector_store %arg8[%c0_18, %c0_19], %35 {strides = array<i32>} : memref<8x32xf32, #tpu.memory_space<vmem>>, vector<8x32xf32>,
    %c0_20 = arith.constant 0 : index
    %c0_21 = arith.constant 0 : index
    %37 = vector.load %arg6[%c0_20, %c0_21] : memref<8x1xf32, #tpu.memory_space<vmem>>, vector<8x1xf32>
    tpu.vector_store %arg6[%c0_20, %c0_21], %16 {strides = array<i32>} : memref<8x1xf32, #tpu.memory_space<vmem>>, vector<8x1xf32>,
    %c0_i32_22 = arith.constant 0 : i32
    %38 = arith.cmpi eq, %arg1, %c0_i32_22 : i32
    %39 = arith.extui %38 : i1 to i32
    %c0_i32_23 = arith.constant 0 : i32
    %40 = arith.cmpi ne, %39, %c0_i32_23 : i32
    scf.if %40 {
      %c0_24 = arith.constant 0 : index
      %c0_25 = arith.constant 0 : index
      %41 = vector.load %arg8[%c0_24, %c0_25] : memref<8x32xf32, #tpu.memory_space<vmem>>, vector<8x32xf32>
      %c0_26 = arith.constant 0 : index
      %c0_27 = arith.constant 0 : index
      %42 = vector.load %arg7[%c0_26, %c0_27] : memref<8x1xf32, #tpu.memory_space<vmem>>, vector<8x1xf32>
      %43 = vector.broadcast %42 : vector<8x1xf32> to vector<8x32xf32>
      %44 = arith.divf %41, %43 : vector<8x32xf32>
      %c0_28 = arith.constant 0 : index
      %c0_29 = arith.constant 0 : index
      %45 = vector.load %arg5[%c0_28, %c0_29] : memref<8x32xf32, #tpu.memory_space<vmem>>, vector<8x32xf32>
      tpu.vector_store %arg5[%c0_28, %c0_29], %44 {strides = array<i32>} : memref<8x32xf32, #tpu.memory_space<vmem>>, vector<8x32xf32>,
    } else {
    }
    return
  }
  func.func @transform_0(%arg0: i32, %arg1: i32) -> (i32, i32, i32) {
    %c0_i32 = arith.constant 0 : i32
    %c0_i32_0 = arith.constant 0 : i32
    return %arg0, %arg1, %c0_i32 : i32, i32, i32
  }
  func.func @transform_1(%arg0: i32, %arg1: i32) -> (i32, i32) {
    %c0_i32 = arith.constant 0 : i32
    %c0_i32_0 = arith.constant 0 : i32
    %c0_i32_1 = arith.constant 0 : i32
    return %c0_i32, %c0_i32_0 : i32, i32
  }
  func.func @transform_2(%arg0: i32, %arg1: i32) -> (i32, i32) {
    %c0_i32 = arith.constant 0 : i32
    %c0_i32_0 = arith.constant 0 : i32
    %c0_i32_1 = arith.constant 0 : i32
    return %c0_i32, %c0_i32_0 : i32, i32
  }
  func.func @transform_3(%arg0: i32, %arg1: i32) -> (i32, i32) {
    %c0_i32 = arith.constant 0 : i32
    %c0_i32_0 = arith.constant 0 : i32
    return %arg0, %c0_i32 : i32, i32
  }
}

</mosaic_0001>

<llo_original>
// kernel: tpu_custom_call.1
$region0: #{tpu_custom_call.1}
  #allocation0 [shape = 'u32[]', space=smem, size = 0x4, offset = 0x4, fixed_abs, tag = 'smem constant byte address 0x4 - core index']
  #allocation1 [shape = 'u32[144,128]{1,0:T(1,128)}', space=vmem, size = 0x12000, scoped, tag = 'internal scratch']
  #allocation2 [shape = 'f32[8,1]{1,0:T(8,128)}', space=vmem, size = 0x1000, scoped, tag = 'scratch operand']
  #allocation3 [shape = 'f32[8,1]{1,0:T(8,128)}', space=vmem, size = 0x1000, scoped, tag = 'scratch operand']
  #allocation4 [shape = 'f32[8,32]{1,0:T(8,128)}', space=vmem, size = 0x1000, scoped, tag = 'scratch operand']
  #allocation5 [shape = 'f32[1,1]{1,0:T(1,128)S(6)}', space=smem, size = 0x200, scoped, tag = 'scoped memory for tpu_custom_call.1']
  %s0 = inlined_call_operand.hbm [shape: f32[8,8,32], index: 0, kind: input, shape index: {}]
  %s1 = inlined_call_operand.hbm [shape: f32[1,32], index: 1, kind: input, shape index: {}]
  %s2 = inlined_call_operand.<no memory space> [shape: f32[1,1], index: 2, kind: input, shape index: {}]
  %s3 = inlined_call_operand.hbm [shape: f32[8,32], index: 3, kind: output, shape index: {}]
  %s4 = sld [smem:[#allocation0]]
  $region38: #{tpu_custom_call.1} parent=0
    _
  %s6 = ssub.s32 1, %s4
  %s7 = scalar_select 0, %s6, %s4
  %8 = sst [smem:[#allocation5]] %s2
  $region1: #{tpu_custom_call.1} parent=0
    #allocation6 [shape = 'u8[32768]{0}', space=vmem, size = 0x8000, scoped, tag = 'input window, operand 0, single buffered']
    #allocation7 [shape = 's32[1]{0}', space=sflag, size = 0x4, scoped, tag = 'scoped memory for tpu_custom_call.1']
    #allocation8 [shape = 's32[1]{0}', space=sflag, size = 0x4, scoped, tag = 'scoped memory for tpu_custom_call.1']
    #allocation9 [shape = 'u8[512]{0}', space=vmem, size = 0x400, scoped, tag = 'input window, operand 1, single buffered']
    #allocation10 [shape = 's32[1]{0}', space=sflag, size = 0x4, scoped, tag = 'scoped memory for tpu_custom_call.1']
    #allocation11 [shape = 'u8[4096]{0}', space=vmem, size = 0x1000, scoped, tag = 'output window, operand 0, single buffered']
    %9 = vsyncpa [#allocation7], 0
    %10 = vsyncpa [#allocation10], 0
    %11 = vsyncpa [#allocation8], 0
    // Predicated region
    $region2: #{tpu_custom_call.1} parent=1 // pred_check
      _
    $region3: #{tpu_custom_call.1} parent=1 // pred_check_branch
      %13 = sbr.rel (0) target = $region5
    $region4: #{tpu_custom_call.1} parent=1 // pred_region
      %s15 = ssub.s32 1024, 1024
      %16 = vsyncadd [#allocation7], %s15
      %s17 = sshll.u32 [#allocation6], 4
      %s18 = int_to_ptr.vmem [resolvable:$true] %s17
      %23 = dma.hbm_to_vmem [thread:$0]  %s0, 1024, %s18, [#allocation7], 128, 128, 8
    $region5: #{tpu_custom_call.1} parent=1 // pred_fallthru
      _
    // Predicated region
    $region6: #{tpu_custom_call.1} parent=1 // pred_check
      _
    $region7: #{tpu_custom_call.1} parent=1 // pred_check_branch
      %25 = sbr.rel (0) target = $region9
    $region8: #{tpu_custom_call.1} parent=1 // pred_region
      %s27 = ssub.s32 16, 16
      %28 = vsyncadd [#allocation10], %s27
      %s30 = sshll.u32 [#allocation9], 4
      %s31 = int_to_ptr.vmem [resolvable:$true] %s30
      %33 = dma.hbm_to_vmem [thread:$0]  %s1, 16, %s31, [#allocation10]
    $region9: #{tpu_custom_call.1} parent=1 // pred_fallthru
      _
    // Predicated region
    $region10: #{tpu_custom_call.1} parent=1 // pred_check
      _
    $region11: #{tpu_custom_call.1} parent=1 // pred_check_branch
      %35 = sbr.rel (0) target = $region13
    $region12: #{tpu_custom_call.1} parent=1 // pred_region
      _
    $region13: #{tpu_custom_call.1} parent=1 // pred_fallthru
      _
    // Predicated region
    $region14: #{tpu_custom_call.1} parent=1 // pred_check
      _
    $region15: #{tpu_custom_call.1} parent=1 // pred_check_branch
      %37 = sbr.rel (0) target = $region17
    $region16: #{tpu_custom_call.1} parent=1 // pred_region
      %38 = dma.done [#allocation7], 1024
    $region17: #{tpu_custom_call.1} parent=1 // pred_fallthru
      _
    // Predicated region
    $region18: #{tpu_custom_call.1} parent=1 // pred_check
      _
    $region19: #{tpu_custom_call.1} parent=1 // pred_check_branch
      %40 = sbr.rel (0) target = $region21
    $region20: #{tpu_custom_call.1} parent=1 // pred_region
      %41 = dma.done [#allocation10], 16
    $region21: #{tpu_custom_call.1} parent=1 // pred_fallthru
      _
    %p42 = scmp.eq.s32.totalorder 0, 0
    // Predicated region
    $region22: #{tpu_custom_call.1} parent=1 // pred_check
      %p43 = pneg %p42
    $region23: #{tpu_custom_call.1} parent=1 // pred_check_branch
      %45 = sbr.rel (%p43) target = $region25
    $region24: #{tpu_custom_call.1} parent=1 // pred_region
      %vm46 = vcmask 7168
      %47 = vst.msk [vmem:[#allocation2] sm:$0xff] %vm46, -inf
      %48 = vst.msk [vmem:[#allocation3] sm:$0xff] %vm46, 0.0
      %vm49 = vcmask 261120
      %50 = vst.msk [vmem:[#allocation4] sm:$0xff] %vm49, 0.0
    $region25: #{tpu_custom_call.1} parent=1 // pred_fallthru
      _
    %v51 = vld [vmem:[#allocation6] sm:$0xff]
    %v52 = vld [vmem:[#allocation6 + $0x8] sm:$0xff]
    %v53 = vld [vmem:[#allocation6 + $0x10] sm:$0xff]
    %v54 = vld [vmem:[#allocation6 + $0x18] sm:$0xff]
    %v55 = vld [vmem:[#allocation6 + $0x20] sm:$0xff]
    %v56 = vld [vmem:[#allocation6 + $0x28] sm:$0xff]
    %v57 = vld [vmem:[#allocation6 + $0x30] sm:$0xff]
    %v58 = vld [vmem:[#allocation6 + $0x38] sm:$0xff]
    %v59 = vld [vmem:[#allocation9] sm:$0x1]
    %s60 = sld [smem:[#allocation5]]
    %v62 = vlaneseq
    %v63 = vshrl.u32 %v62, 7
    %v64 = vsub.s32 0, %v63
    %v65 = vrot.slane %v59, %v64
    %v67 = vmul.f32 %v51, %v65
    %v68 = vmul.f32 %v52, %v65
    %v69 = vmul.f32 %v53, %v65
    %v70 = vmul.f32 %v54, %v65
    %v71 = vmul.f32 %v55, %v65
    %v72 = vmul.f32 %v56, %v65
    %v73 = vmul.f32 %v57, %v65
    %v74 = vmul.f32 %v58, %v65
    %vm75 = vcmask 261120
    %v76 = vsel %vm75, %v67, 0.0
    %77 = vadd.xlane.f32.xlu0 %v76
    %v78 = vpop.xlane.xlu0 %77
    %v79 = vsel %vm75, %v68, 0.0
    %80 = vadd.xlane.f32.xlu0 %v79
    %v81 = vpop.xlane.xlu0 %80
    %v82 = vsel %vm75, %v69, 0.0
    %83 = vadd.xlane.f32.xlu0 %v82
    %v84 = vpop.xlane.xlu0 %83
    %v85 = vsel %vm75, %v70, 0.0
    %86 = vadd.xlane.f32.xlu0 %v85
    %v87 = vpop.xlane.xlu0 %86
    %v88 = vsel %vm75, %v71, 0.0
    %89 = vadd.xlane.f32.xlu0 %v88
    %v90 = vpop.xlane.xlu0 %89
    %v91 = vsel %vm75, %v72, 0.0
    %92 = vadd.xlane.f32.xlu0 %v91
    %v93 = vpop.xlane.xlu0 %92
    %v94 = vsel %vm75, %v73, 0.0
    %95 = vadd.xlane.f32.xlu0 %v94
    %v96 = vpop.xlane.xlu0 %95
    %v97 = vsel %vm75, %v74, 0.0
    %98 = vadd.xlane.f32.xlu0 %v97
    %v99 = vpop.xlane.xlu0 %98
    %v100 = vstv %s60
    %v101 = vadd.f32 %v78, %v100
    %v102 = vadd.f32 %v81, %v100
    %v103 = vadd.f32 %v84, %v100
    %v104 = vadd.f32 %v87, %v100
    %v105 = vadd.f32 %v90, %v100
    %v106 = vadd.f32 %v93, %v100
    %v107 = vadd.f32 %v96, %v100
    %v108 = vadd.f32 %v99, %v100
    %v109 = vtanh.pop %v101
    %v110 = vtanh.pop %v102
    %v111 = vtanh.pop %v103
    %v112 = vtanh.pop %v104
    %v113 = vtanh.pop %v105
    %v114 = vtanh.pop %v106
    %v115 = vtanh.pop %v107
    %v116 = vtanh.pop %v108
    %v117 = vld [vmem:[#allocation2] sm:$0xff]
    %v126 = vlaneseq
    %v127 = vand.u32 %v126, 127
    %v128 = vlaneseq
    %v129 = vshrl.u32 %v128, 7
    %v130 = vsub.s32 %v127, %v129
    %v131 = vrot.slane %v109, %v130
    %v132 = vlaneseq
    %v133 = vshrl.u32 %v132, 7
    %v134 = vsub.s32 %v127, %v133
    %v135 = vrot.slane %v110, %v134
    %v136 = vlaneseq
    %v137 = vshrl.u32 %v136, 7
    %v138 = vsub.s32 %v127, %v137
    %v139 = vrot.slane %v111, %v138
    %v140 = vlaneseq
    %v141 = vshrl.u32 %v140, 7
    %v142 = vsub.s32 %v127, %v141
    %v143 = vrot.slane %v112, %v142
    %v144 = vlaneseq
    %v145 = vshrl.u32 %v144, 7
    %v146 = vsub.s32 %v127, %v145
    %v147 = vrot.slane %v113, %v146
    %v148 = vlaneseq
    %v149 = vshrl.u32 %v148, 7
    %v150 = vsub.s32 %v127, %v149
    %v151 = vrot.slane %v114, %v150
    %v152 = vlaneseq
    %v153 = vshrl.u32 %v152, 7
    %v154 = vsub.s32 %v127, %v153
    %v155 = vrot.slane %v115, %v154
    %v156 = vlaneseq
    %v157 = vshrl.u32 %v156, 7
    %v158 = vsub.s32 %v127, %v157
    %v159 = vrot.slane %v116, %v158
    %vm160 = vcmask 1041409
    %v161 = vsel %vm160, %v135, %v131
    %vm162 = vcmask 1042434
    %v163 = vsel %vm162, %v139, %v161
    %vm164 = vcmask 1043459
    %v165 = vsel %vm164, %v143, %v163
    %vm166 = vcmask 1044484
    %v167 = vsel %vm166, %v147, %v165
    %vm168 = vcmask 1045509
    %v169 = vsel %vm168, %v151, %v167
    %vm170 = vcmask 1046534
    %v171 = vsel %vm170, %v155, %v169
    %vm172 = vcmask 1047559
    %v173 = vsel %vm172, %v159, %v171
    %vm175 = vcmask 64512
    %v176 = vsel %vm175, %v173, -inf
    %177 = vmax.xlane.f32.xlu0 %v176
    %v178 = vpop.xlane.xlu0 %177
    %v179 = vmax.f32 %v117, %v178
    %v180 = vsub.f32 %v117, %v179
    %v181 = vmul.f32 %v180, 1.442695
    %v182 = vpow.pop %v181
    %184 = vset.pattern.permute.xlu0 0
    %185 = vperm.xlu0 %184, %v179
    %v186 = vpop.permute.xlu0 %185
    %v187 = vlaneseq
    %v188 = vshrl.u32 %v187, 7
    %v189 = vsub.s32 0, %v188
    %v190 = vrot.slane %v186, %v189
    %v191 = vlaneseq
    %v192 = vshrl.u32 %v191, 7
    %v193 = vsub.s32 1, %v192
    %v194 = vrot.slane %v186, %v193
    %v195 = vlaneseq
    %v196 = vshrl.u32 %v195, 7
    %v197 = vsub.s32 2, %v196
    %v198 = vrot.slane %v186, %v197
    %v199 = vlaneseq
    %v200 = vshrl.u32 %v199, 7
    %v201 = vsub.s32 3, %v200
    %v202 = vrot.slane %v186, %v201
    %v203 = vlaneseq
    %v204 = vshrl.u32 %v203, 7
    %v205 = vsub.s32 4, %v204
    %v206 = vrot.slane %v186, %v205
    %v207 = vlaneseq
    %v208 = vshrl.u32 %v207, 7
    %v209 = vsub.s32 5, %v208
    %v210 = vrot.slane %v186, %v209
    %v211 = vlaneseq
    %v212 = vshrl.u32 %v211, 7
    %v213 = vsub.s32 6, %v212
    %v214 = vrot.slane %v186, %v213
    %v215 = vlaneseq
    %v216 = vshrl.u32 %v215, 7
    %v217 = vsub.s32 7, %v216
    %v218 = vrot.slane %v186, %v217
    %v227 = vsub.f32 %v109, %v190
    %v228 = vsub.f32 %v110, %v194
    %v229 = vsub.f32 %v111, %v198
    %v230 = vsub.f32 %v112, %v202
    %v231 = vsub.f32 %v113, %v206
    %v232 = vsub.f32 %v114, %v210
    %v233 = vsub.f32 %v115, %v214
    %v234 = vsub.f32 %v116, %v218
    %v235 = vmul.f32 %v227, 1.442695
    %v236 = vpow.pop %v235
    %v237 = vmul.f32 %v228, 1.442695
    %v238 = vpow.pop %v237
    %v239 = vmul.f32 %v229, 1.442695
    %v240 = vpow.pop %v239
    %v241 = vmul.f32 %v230, 1.442695
    %v242 = vpow.pop %v241
    %v243 = vmul.f32 %v231, 1.442695
    %v244 = vpow.pop %v243
    %v245 = vmul.f32 %v232, 1.442695
    %v246 = vpow.pop %v245
    %v247 = vmul.f32 %v233, 1.442695
    %v248 = vpow.pop %v247
    %v249 = vmul.f32 %v234, 1.442695
    %v250 = vpow.pop %v249
    %v251 = vld [vmem:[#allocation3] sm:$0xff]
    %v252 = vmul.f32 %v182, %v251
    %261 = vset.pattern.permute.xlu0 0
    %262 = vperm.xlu0 %261, %v236
    %v263 = vpop.permute.xlu0 %262
    %264 = vset.pattern.permute.xlu0 0
    %265 = vperm.xlu0 %264, %v238
    %v266 = vpop.permute.xlu0 %265
    %267 = vset.pattern.permute.xlu0 0
    %268 = vperm.xlu0 %267, %v240
    %v269 = vpop.permute.xlu0 %268
    %270 = vset.pattern.permute.xlu0 0
    %271 = vperm.xlu0 %270, %v242
    %v272 = vpop.permute.xlu0 %271
    %273 = vset.pattern.permute.xlu0 0
    %274 = vperm.xlu0 %273, %v244
    %v275 = vpop.permute.xlu0 %274
    %276 = vset.pattern.permute.xlu0 0
    %277 = vperm.xlu0 %276, %v246
    %v278 = vpop.permute.xlu0 %277
    %279 = vset.pattern.permute.xlu0 0
    %280 = vperm.xlu0 %279, %v248
    %v281 = vpop.permute.xlu0 %280
    %282 = vset.pattern.permute.xlu0 0
    %283 = vperm.xlu0 %282, %v250
    %v284 = vpop.permute.xlu0 %283
    %v285 = vlaneseq
    %v286 = vshrl.u32 %v285, 7
    %v287 = vsub.s32 %v127, %v286
    %v288 = vrot.slane %v263, %v287
    %v289 = vlaneseq
    %v290 = vshrl.u32 %v289, 7
    %v291 = vsub.s32 %v127, %v290
    %v292 = vrot.slane %v266, %v291
    %v293 = vlaneseq
    %v294 = vshrl.u32 %v293, 7
    %v295 = vsub.s32 %v127, %v294
    %v296 = vrot.slane %v269, %v295
    %v297 = vlaneseq
    %v298 = vshrl.u32 %v297, 7
    %v299 = vsub.s32 %v127, %v298
    %v300 = vrot.slane %v272, %v299
    %v301 = vlaneseq
    %v302 = vshrl.u32 %v301, 7
    %v303 = vsub.s32 %v127, %v302
    %v304 = vrot.slane %v275, %v303
    %v305 = vlaneseq
    %v306 = vshrl.u32 %v305, 7
    %v307 = vsub.s32 %v127, %v306
    %v308 = vrot.slane %v278, %v307
    %v309 = vlaneseq
    %v310 = vshrl.u32 %v309, 7
    %v311 = vsub.s32 %v127, %v310
    %v312 = vrot.slane %v281, %v311
    %v313 = vlaneseq
    %v314 = vshrl.u32 %v313, 7
    %v315 = vsub.s32 %v127, %v314
    %v316 = vrot.slane %v284, %v315
    %v317 = vsel %vm160, %v292, %v288
    %v318 = vsel %vm162, %v296, %v317
    %v319 = vsel %vm164, %v300, %v318
    %v320 = vsel %vm166, %v304, %v319
    %v321 = vsel %vm168, %v308, %v320
    %v322 = vsel %vm170, %v312, %v321
    %v323 = vsel %vm172, %v316, %v322
    %v325 = vsel %vm175, %v323, 0.0
    %326 = vadd.xlane.f32.xlu0 %v325
    %v327 = vpop.xlane.xlu0 %326
    %v328 = vadd.f32 %v252, %v327
    %vm329 = vcmask 7168
    %330 = vst.msk [vmem:[#allocation3] sm:$0xff] %vm329, %v328
    %v331 = vld [vmem:[#allocation4] sm:$0xff]
    %333 = vset.pattern.permute.xlu0 0
    %334 = vperm.xlu0 %333, %v182
    %v335 = vpop.permute.xlu0 %334
    %v337 = vmul.f32 %v335, %v331
    %v346 = vmul.f32 %v51, %v263
    %v347 = vmul.f32 %v52, %v266
    %v348 = vmul.f32 %v53, %v269
    %v349 = vmul.f32 %v54, %v272
    %v350 = vmul.f32 %v55, %v275
    %v351 = vmul.f32 %v56, %v278
    %v352 = vmul.f32 %v57, %v281
    %v353 = vmul.f32 %v58, %v284
    %v354 = vsel %vm75, %v346, 0.0
    %v355 = vrot.slane %v354, 4
    %v356 = vadd.f32 %v354, %v355
    %v357 = vrot.slane %v356, 2
    %v358 = vadd.f32 %v356, %v357
    %v359 = vrot.slane %v358, 1
    %v360 = vadd.f32 %v358, %v359
    %v361 = vsel %vm75, %v347, 0.0
    %v362 = vrot.slane %v361, 4
    %v363 = vadd.f32 %v361, %v362
    %v364 = vrot.slane %v363, 2
    %v365 = vadd.f32 %v363, %v364
    %v366 = vrot.slane %v365, 1
    %v367 = vadd.f32 %v365, %v366
    %v368 = vsel %vm75, %v348, 0.0
    %v369 = vrot.slane %v368, 4
    %v370 = vadd.f32 %v368, %v369
    %v371 = vrot.slane %v370, 2
    %v372 = vadd.f32 %v370, %v371
    %v373 = vrot.slane %v372, 1
    %v374 = vadd.f32 %v372, %v373
    %v375 = vsel %vm75, %v349, 0.0
    %v376 = vrot.slane %v375, 4
    %v377 = vadd.f32 %v375, %v376
    %v378 = vrot.slane %v377, 2
    %v379 = vadd.f32 %v377, %v378
    %v380 = vrot.slane %v379, 1
    %v381 = vadd.f32 %v379, %v380
    %v382 = vsel %vm75, %v350, 0.0
    %v383 = vrot.slane %v382, 4
    %v384 = vadd.f32 %v382, %v383
    %v385 = vrot.slane %v384, 2
    %v386 = vadd.f32 %v384, %v385
    %v387 = vrot.slane %v386, 1
    %v388 = vadd.f32 %v386, %v387
    %v389 = vsel %vm75, %v351, 0.0
    %v390 = vrot.slane %v389, 4
    %v391 = vadd.f32 %v389, %v390
    %v392 = vrot.slane %v391, 2
    %v393 = vadd.f32 %v391, %v392
    %v394 = vrot.slane %v393, 1
    %v395 = vadd.f32 %v393, %v394
    %v396 = vsel %vm75, %v352, 0.0
    %v397 = vrot.slane %v396, 4
    %v398 = vadd.f32 %v396, %v397
    %v399 = vrot.slane %v398, 2
    %v400 = vadd.f32 %v398, %v399
    %v401 = vrot.slane %v400, 1
    %v402 = vadd.f32 %v400, %v401
    %v403 = vsel %vm75, %v353, 0.0
    %v404 = vrot.slane %v403, 4
    %v405 = vadd.f32 %v403, %v404
    %v406 = vrot.slane %v405, 2
    %v407 = vadd.f32 %v405, %v406
    %v408 = vrot.slane %v407, 1
    %v409 = vadd.f32 %v407, %v408
    %v418 = vsel %vm160, %v367, %v360
    %v419 = vsel %vm162, %v374, %v418
    %v420 = vsel %vm164, %v381, %v419
    %v421 = vsel %vm166, %v388, %v420
    %v422 = vsel %vm168, %v395, %v421
    %v423 = vsel %vm170, %v402, %v422
    %v424 = vsel %vm172, %v409, %v423
    %v426 = vadd.f32 %v337, %v424
    %427 = vst.msk [vmem:[#allocation4] sm:$0xff] %vm75, %v426
    %428 = vst.msk [vmem:[#allocation2] sm:$0xff] %vm329, %v179
    // Predicated region
    $region26: #{tpu_custom_call.1} parent=1 // pred_check
      %p429 = pneg %p42
    $region27: #{tpu_custom_call.1} parent=1 // pred_check_branch
      %431 = sbr.rel (%p429) target = $region29
    $region28: #{tpu_custom_call.1} parent=1 // pred_region
      %v432 = vld [vmem:[#allocation4] sm:$0xff]
      %v433 = vld [vmem:[#allocation3] sm:$0xff]
      %435 = vset.pattern.permute.xlu0 0
      %436 = vperm.xlu0 %435, %v433
      %v437 = vpop.permute.xlu0 %436
      %v439 = vrcp.pop %v437
      %v440 = vmul.f32 %v432, %v439
      %441 = vst.msk [vmem:[#allocation11] sm:$0xff] %vm75, %v440
    $region29: #{tpu_custom_call.1} parent=1 // pred_fallthru
      _
    // Predicated region
    $region30: #{tpu_custom_call.1} parent=1 // pred_check
      _
    $region31: #{tpu_custom_call.1} parent=1 // pred_check_branch
      %443 = sbr.rel (0) target = $region33
    $region32: #{tpu_custom_call.1} parent=1 // pred_region
      %s445 = ssub.s32 128, 128
      %446 = vsyncadd [#allocation8], %s445
      %s448 = sshll.u32 [#allocation11], 4
      %s449 = int_to_ptr.vmem [resolvable:$true] %s448
      %451 = dma.vmem_to_hbm [thread:$0]  %s449, 128, %s3, [#allocation8]
    $region33: #{tpu_custom_call.1} parent=1 // pred_fallthru
      _
    // Predicated region
    $region34: #{tpu_custom_call.1} parent=1 // pred_check
      _
    $region35: #{tpu_custom_call.1} parent=1 // pred_check_branch
      %453 = sbr.rel (0) target = $region37
    $region36: #{tpu_custom_call.1} parent=1 // pred_region
      %454 = dma.done [#allocation8], 128
    $region37: #{tpu_custom_call.1} parent=1 // pred_fallthru
      _
    %455 = vsyncpa [#allocation7], 1
    %456 = vsyncpa [#allocation10], 1
    %457 = vsyncpa [#allocation8], 1

</llo_original>
